<compile_context>
chip_gen: v6e
topology: v6e:2x2x1
jax: 0.10.0
libtpu: 0.0.40
codegen_flags: <defaults>
</compile_context>

<pallas_src>
import jax
import jax.numpy as jnp
from jax.experimental import pallas as pl
from jax.experimental.pallas import tpu as pltpu

LANE = 128
BN_EPS = 1e-5


def _round_up(n, m):
    return ((n + m - 1) // m) * m


def gcn2_kernel(adj_ref, x_ref,
                w1_ref, g1_ref, beta1_ref,
                w2_ref, g2_ref, beta2_ref,
                out_ref):
    adj = adj_ref[...]          # [N, N] normalized adjacency
    x = x_ref[...]              # [N, K_pad]
    inv_n = 1.0 / adj.shape[0]  # static

    # ---- layer 1: GCNConv -> BatchNorm1d -> ReLU (bias absorbed by BN) ----
    xw = jnp.dot(x, w1_ref[...], preferred_element_type=jnp.float32)   # [N, H_pad]
    h = jnp.dot(adj, xw, preferred_element_type=jnp.float32)           # [N, H_pad]
    mu = jnp.sum(h, axis=0, keepdims=True) * inv_n
    ex2 = jnp.sum(h * h, axis=0, keepdims=True) * inv_n
    var = jnp.maximum(ex2 - mu * mu, 0.0)
    h = (h - mu) * (jax.lax.rsqrt(var + BN_EPS) * g1_ref[...]) + beta1_ref[...]
    h = jnp.maximum(h, 0.0)

    # ---- layer 2: GCNConv -> BatchNorm1d (no ReLU on the last layer) ----
    hw = jnp.dot(h, w2_ref[...], preferred_element_type=jnp.float32)   # [N, O]
    o = jnp.dot(adj, hw, preferred_element_type=jnp.float32)           # [N, O]
    mu2 = jnp.sum(o, axis=0, keepdims=True) * inv_n
    ex2_2 = jnp.sum(o * o, axis=0, keepdims=True) * inv_n
    var2 = jnp.maximum(ex2_2 - mu2 * mu2, 0.0)
    out_ref[...] = (o - mu2) * (jax.lax.rsqrt(var2 + BN_EPS) * g2_ref[...]) + beta2_ref[...]


def prepare_params(params):
    """One-time weight padding (hoisted out of the per-call hot path).

    Pads the contraction dim and hidden dim to 128.  Padded hidden columns
    stay exactly zero through BN (gamma=1, beta=0 on pads) and ReLU, and the
    zero rows of w2 keep layer 2 unchanged.  Bias terms b1/b2 are dropped:
    they are exact no-ops under batch-statistic normalization.
    """
    f_in, hidden = params["w1"].shape
    f_out = params["w2"].shape[1]
    k_pad = _round_up(f_in, LANE)
    h_pad = _round_up(hidden, LANE)

    w1_p = jnp.zeros((k_pad, h_pad), jnp.float32).at[:f_in, :hidden].set(params["w1"])
    g1_p = jnp.ones((1, h_pad), jnp.float32).at[:, :hidden].set(params["g1"])
    beta1_p = jnp.zeros((1, h_pad), jnp.float32).at[:, :hidden].set(params["beta1"])
    w2_p = jnp.zeros((h_pad, f_out), jnp.float32).at[:hidden, :].set(params["w2"])

    return dict(w1=w1_p, g1=g1_p, beta1=beta1_p,
                w2=w2_p, g2=params["g2"], beta2=params["beta2"])


def build_normalized_adjacency(edge_index, num_nodes):
    """edge_index: [2, E] int32.  Returns dense D^-1/2 (A + I) D^-1/2."""
    src, dst = edge_index[0], edge_index[1]
    rows = jnp.concatenate([dst, src])   # single fused scatter for both directions
    cols = jnp.concatenate([src, dst])
    a = jnp.zeros((num_nodes, num_nodes), jnp.float32).at[rows, cols].set(1.0)
    eye = jnp.eye(num_nodes, dtype=jnp.float32)
    a_hat = a * (1.0 - eye) + eye        # drop raw self loops, add fresh ones
    deg = jnp.sum(a_hat, axis=1)
    d_inv_sqrt = jax.lax.rsqrt(deg)
    return a_hat * d_inv_sqrt[:, None] * d_inv_sqrt[None, :]


@jax.jit
def gcn_forward(x, edge_index, prep):
    """x: [N, F_in] f32, edge_index: [2, E] i32, prep: output of prepare_params."""
    n, f_in = x.shape
    k_pad = prep["w1"].shape[0]
    f_out = prep["w2"].shape[1]

    adj = build_normalized_adjacency(edge_index, n)
    x_p = jnp.pad(x, ((0, 0), (0, k_pad - f_in)))

    args = (adj, x_p,
            prep["w1"], prep["g1"], prep["beta1"],
            prep["w2"], prep["g2"], prep["beta2"])

    def full_spec(a):
        # Tiny problem: whole array is the block, single grid point.
        return pl.BlockSpec(a.shape, lambda i, nd=a.ndim: (0,) * nd)

    return pl.pallas_call(
        gcn2_kernel,
        out_shape=jax.ShapeDtypeStruct((n, f_out), jnp.float32),
        grid=(1,),
        in_specs=[full_spec(a) for a in args],
        out_specs=pl.BlockSpec((n, f_out), lambda i: (0, 0)),
        compiler_params=pltpu.CompilerParams(
            dimension_semantics=("arbitrary",)),
    )(*args)


def init_params(key, input_dim, hidden_dim, output_dim):
    ks = jax.random.split(key, 8)

    def glorot(k, fan_in, fan_out):
        lim = jnp.sqrt(6.0 / (fan_in + fan_out))
        return jax.random.uniform(k, (fan_in, fan_out), jnp.float32, -lim, lim)

    w1 = glorot(ks[0], input_dim, hidden_dim)
    b1 = 0.1 * jax.random.normal(ks[1], (1, hidden_dim), jnp.float32)
    g1 = 1.0 + 0.1 * jax.random.normal(ks[2], (1, hidden_dim), jnp.float32)
    beta1 = 0.1 * jax.random.normal(ks[3], (1, hidden_dim), jnp.float32)

    w2 = glorot(ks[4], hidden_dim, output_dim)
    b2 = 0.1 * jax.random.normal(ks[5], (1, output_dim), jnp.float32)
    g2 = 1.0 + 0.1 * jax.random.normal(ks[6], (1, output_dim), jnp.float32)
    beta2 = 0.1 * jax.random.normal(ks[7], (1, output_dim), jnp.float32)

    return dict(w1=w1, b1=b1, g1=g1, beta1=beta1,
                w2=w2, b2=b2, g2=g2, beta2=beta2)


def reference_forward(x, adj, p):
    """Full-semantics reference: biases included, two-pass BN statistics."""
    def bn(h, g, beta):
        mu = jnp.mean(h, axis=0, keepdims=True)
        var = jnp.mean((h - mu) ** 2, axis=0, keepdims=True)
        return (h - mu) / jnp.sqrt(var + BN_EPS) * g + beta

    h = adj @ (x @ p["w1"]) + p["b1"]
    h = jnp.maximum(bn(h, p["g1"], p["beta1"]), 0.0)
    o = adj @ (h @ p["w2"]) + p["b2"]
    return bn(o, p["g2"], p["beta2"])


if __name__ == "__main__":
    key = jax.random.PRNGKey(0)
    k_feat, k_edge, k_param = jax.random.split(key, 3)

    num_nodes = 64
    input_dim = 16
    hidden_dim = 32
    output_dim = 8
    num_edges = 192

    src = jax.random.randint(k_edge, (num_edges,), 0, num_nodes)
    dst = jax.random.randint(jax.random.fold_in(k_edge, 1), (num_edges,), 0, num_nodes)
    edge_index = jnp.stack([src, dst], axis=0).astype(jnp.int32)

    x = jax.random.normal(k_feat, (num_nodes, input_dim), jnp.float32)
    params = init_params(k_param, input_dim, hidden_dim, output_dim)

    # One-time preparation (padding) of the weights — not in the hot path.
    prep = prepare_params(params)

    out = gcn_forward(x, edge_index, prep)
    out = jax.block_until_ready(out)

    adj_norm = build_normalized_adjacency(edge_index, num_nodes)
    ref = reference_forward(x, adj_norm, params)
    assert out.shape == (num_nodes, output_dim)
    err = float(jnp.max(jnp.abs(out - ref)))
    assert jnp.allclose(out, ref, atol=1e-4, rtol=1e-4), err

    print("KERNEL_OK")
</pallas_src>

<mosaic_0001>
module attributes {stable_mosaic.version = 11 : i64} {
  func.func @gcn2_kernel(%arg0: i32, %arg1: memref<64x64xf32, #tpu.memory_space<vmem>>, %arg2: memref<64x128xf32, #tpu.memory_space<vmem>>, %arg3: memref<128x128xf32, #tpu.memory_space<vmem>>, %arg4: memref<1x128xf32, #tpu.memory_space<vmem>>, %arg5: memref<1x128xf32, #tpu.memory_space<vmem>>, %arg6: memref<128x8xf32, #tpu.memory_space<vmem>>, %arg7: memref<1x8xf32, #tpu.memory_space<vmem>>, %arg8: memref<1x8xf32, #tpu.memory_space<vmem>>, %arg9: memref<64x8xf32, #tpu.memory_space<vmem>>) attributes {dimension_semantics = [#tpu.dimension_semantics<arbitrary>], iteration_bounds = array<i64: 1>, scalar_prefetch = 0 : i64, scratch_operands = 0 : i64, tpu.core_type = #tpu.core_type<tc>, window_params = [{pipeline_mode = #tpu.pipeline_mode<synchronous>, transform_indices = @transform_0, window_bounds = array<i64: 64, 64>}, {pipeline_mode = #tpu.pipeline_mode<synchronous>, transform_indices = @transform_1, window_bounds = array<i64: 64, 128>}, {pipeline_mode = #tpu.pipeline_mode<synchronous>, transform_indices = @transform_2, window_bounds = array<i64: 128, 128>}, {pipeline_mode = #tpu.pipeline_mode<synchronous>, transform_indices = @transform_3, window_bounds = array<i64: 1, 128>}, {pipeline_mode = #tpu.pipeline_mode<synchronous>, transform_indices = @transform_4, window_bounds = array<i64: 1, 128>}, {pipeline_mode = #tpu.pipeline_mode<synchronous>, transform_indices = @transform_5, window_bounds = array<i64: 128, 8>}, {pipeline_mode = #tpu.pipeline_mode<synchronous>, transform_indices = @transform_6, window_bounds = array<i64: 1, 8>}, {pipeline_mode = #tpu.pipeline_mode<synchronous>, transform_indices = @transform_7, window_bounds = array<i64: 1, 8>}, {pipeline_mode = #tpu.pipeline_mode<synchronous>, transform_indices = @transform_8, window_bounds = array<i64: 64, 8>}]} {
    %c0 = arith.constant 0 : index
    %c0_0 = arith.constant 0 : index
    %0 = vector.load %arg1[%c0, %c0_0] : memref<64x64xf32, #tpu.memory_space<vmem>>, vector<64x64xf32>
    %c0_1 = arith.constant 0 : index
    %c0_2 = arith.constant 0 : index
    %1 = vector.load %arg2[%c0_1, %c0_2] : memref<64x128xf32, #tpu.memory_space<vmem>>, vector<64x128xf32>
    %c0_3 = arith.constant 0 : index
    %c0_4 = arith.constant 0 : index
    %2 = vector.load %arg3[%c0_3, %c0_4] : memref<128x128xf32, #tpu.memory_space<vmem>>, vector<128x128xf32>
    %cst = arith.constant dense<0.000000e+00> : vector<64x128xf32>
    %3 = tpu.matmul %1, %2, %cst {dimension_numbers = #tpu.dot_dimension_numbers<[1], [0], [0], [1], [0, 0, 1, 1], [], []>} : vector<64x128xf32>, vector<128x128xf32>, vector<64x128xf32> -> vector<64x128xf32>
    %cst_5 = arith.constant dense<0.000000e+00> : vector<64x128xf32>
    %4 = tpu.matmul %0, %3, %cst_5 {dimension_numbers = #tpu.dot_dimension_numbers<[1], [0], [0], [1], [0, 0, 1, 1], [], []>} : vector<64x64xf32>, vector<64x128xf32>, vector<64x128xf32> -> vector<64x128xf32>
    %cst_6 = arith.constant dense<0.000000e+00> : vector<128xf32>
    %5 = vector.multi_reduction <add>, %4, %cst_6 [0] : vector<64x128xf32> to vector<128xf32>
    %6 = vector.shape_cast %5 : vector<128xf32> to vector<1x128xf32>
    %cst_7 = arith.constant 1.562500e-02 : f32
    %7 = vector.broadcast %cst_7 : f32 to vector<1x128xf32>
    %8 = arith.mulf %6, %7 : vector<1x128xf32>
    %9 = arith.mulf %4, %4 : vector<64x128xf32>
    %cst_8 = arith.constant dense<0.000000e+00> : vector<128xf32>
    %10 = vector.multi_reduction <add>, %9, %cst_8 [0] : vector<64x128xf32> to vector<128xf32>
    %11 = vector.shape_cast %10 : vector<128xf32> to vector<1x128xf32>
    %cst_9 = arith.constant 1.562500e-02 : f32
    %12 = vector.broadcast %cst_9 : f32 to vector<1x128xf32>
    %13 = arith.mulf %11, %12 : vector<1x128xf32>
    %14 = arith.mulf %8, %8 : vector<1x128xf32>
    %15 = arith.subf %13, %14 : vector<1x128xf32>
    %cst_10 = arith.constant 0.000000e+00 : f32
    %16 = vector.broadcast %cst_10 : f32 to vector<1x128xf32>
    %17 = arith.maximumf %15, %16 : vector<1x128xf32>
    %18 = vector.broadcast %8 : vector<1x128xf32> to vector<64x128xf32>
    %19 = arith.subf %4, %18 : vector<64x128xf32>
    %cst_11 = arith.constant 9.99999974E-6 : f32
    %20 = vector.broadcast %cst_11 : f32 to vector<1x128xf32>
    %21 = arith.addf %17, %20 : vector<1x128xf32>
    %22 = math.rsqrt %21 : vector<1x128xf32>
    %c0_12 = arith.constant 0 : index
    %c0_13 = arith.constant 0 : index
    %23 = vector.load %arg4[%c0_12, %c0_13] : memref<1x128xf32, #tpu.memory_space<vmem>>, vector<1x128xf32>
    %24 = arith.mulf %22, %23 : vector<1x128xf32>
    %25 = vector.broadcast %24 : vector<1x128xf32> to vector<64x128xf32>
    %26 = arith.mulf %19, %25 : vector<64x128xf32>
    %c0_14 = arith.constant 0 : index
    %c0_15 = arith.constant 0 : index
    %27 = vector.load %arg5[%c0_14, %c0_15] : memref<1x128xf32, #tpu.memory_space<vmem>>, vector<1x128xf32>
    %28 = vector.broadcast %27 : vector<1x128xf32> to vector<64x128xf32>
    %29 = arith.addf %26, %28 : vector<64x128xf32>
    %cst_16 = arith.constant 0.000000e+00 : f32
    %30 = vector.broadcast %cst_16 : f32 to vector<64x128xf32>
    %31 = arith.maximumf %29, %30 : vector<64x128xf32>
    %c0_17 = arith.constant 0 : index
    %c0_18 = arith.constant 0 : index
    %32 = vector.load %arg6[%c0_17, %c0_18] : memref<128x8xf32, #tpu.memory_space<vmem>>, vector<128x8xf32>
    %cst_19 = arith.constant dense<0.000000e+00> : vector<64x8xf32>
    %33 = tpu.matmul %31, %32, %cst_19 {dimension_numbers = #tpu.dot_dimension_numbers<[1], [0], [0], [1], [0, 0, 1, 1], [], []>} : vector<64x128xf32>, vector<128x8xf32>, vector<64x8xf32> -> vector<64x8xf32>
    %cst_20 = arith.constant dense<0.000000e+00> : vector<64x8xf32>
    %34 = tpu.matmul %0, %33, %cst_20 {dimension_numbers = #tpu.dot_dimension_numbers<[1], [0], [0], [1], [0, 0, 1, 1], [], []>} : vector<64x64xf32>, vector<64x8xf32>, vector<64x8xf32> -> vector<64x8xf32>
    %cst_21 = arith.constant dense<0.000000e+00> : vector<8xf32>
    %35 = vector.multi_reduction <add>, %34, %cst_21 [0] : vector<64x8xf32> to vector<8xf32>
    %36 = vector.shape_cast %35 : vector<8xf32> to vector<1x8xf32>
    %cst_22 = arith.constant 1.562500e-02 : f32
    %37 = vector.broadcast %cst_22 : f32 to vector<1x8xf32>
    %38 = arith.mulf %36, %37 : vector<1x8xf32>
    %39 = arith.mulf %34, %34 : vector<64x8xf32>
    %cst_23 = arith.constant dense<0.000000e+00> : vector<8xf32>
    %40 = vector.multi_reduction <add>, %39, %cst_23 [0] : vector<64x8xf32> to vector<8xf32>
    %41 = vector.shape_cast %40 : vector<8xf32> to vector<1x8xf32>
    %cst_24 = arith.constant 1.562500e-02 : f32
    %42 = vector.broadcast %cst_24 : f32 to vector<1x8xf32>
    %43 = arith.mulf %41, %42 : vector<1x8xf32>
    %44 = arith.mulf %38, %38 : vector<1x8xf32>
    %45 = arith.subf %43, %44 : vector<1x8xf32>
    %cst_25 = arith.constant 0.000000e+00 : f32
    %46 = vector.broadcast %cst_25 : f32 to vector<1x8xf32>
    %47 = arith.maximumf %45, %46 : vector<1x8xf32>
    %48 = vector.broadcast %38 : vector<1x8xf32> to vector<64x8xf32>
    %49 = arith.subf %34, %48 : vector<64x8xf32>
    %cst_26 = arith.constant 9.99999974E-6 : f32
    %50 = vector.broadcast %cst_26 : f32 to vector<1x8xf32>
    %51 = arith.addf %47, %50 : vector<1x8xf32>
    %52 = math.rsqrt %51 : vector<1x8xf32>
    %c0_27 = arith.constant 0 : index
    %c0_28 = arith.constant 0 : index
    %53 = vector.load %arg7[%c0_27, %c0_28] : memref<1x8xf32, #tpu.memory_space<vmem>>, vector<1x8xf32>
    %54 = arith.mulf %52, %53 : vector<1x8xf32>
    %55 = vector.broadcast %54 : vector<1x8xf32> to vector<64x8xf32>
    %56 = arith.mulf %49, %55 : vector<64x8xf32>
    %c0_29 = arith.constant 0 : index
    %c0_30 = arith.constant 0 : index
    %57 = vector.load %arg8[%c0_29, %c0_30] : memref<1x8xf32, #tpu.memory_space<vmem>>, vector<1x8xf32>
    %58 = vector.broadcast %57 : vector<1x8xf32> to vector<64x8xf32>
    %59 = arith.addf %56, %58 : vector<64x8xf32>
    %c0_31 = arith.constant 0 : index
    %c0_32 = arith.constant 0 : index
    %60 = vector.load %arg9[%c0_31, %c0_32] : memref<64x8xf32, #tpu.memory_space<vmem>>, vector<64x8xf32>
    tpu.vector_store %arg9[%c0_31, %c0_32], %59 {strides = array<i32>} : memref<64x8xf32, #tpu.memory_space<vmem>>, vector<64x8xf32>,
    return
  }
  func.func @transform_0(%arg0: i32) -> (i32, i32) {
    %c0_i32 = arith.constant 0 : i32
    %c0_i32_0 = arith.constant 0 : i32
    %c0_i32_1 = arith.constant 0 : i32
    return %c0_i32, %c0_i32_0 : i32, i32
  }
  func.func @transform_1(%arg0: i32) -> (i32, i32) {
    %c0_i32 = arith.constant 0 : i32
    %c0_i32_0 = arith.constant 0 : i32
    %c0_i32_1 = arith.constant 0 : i32
    return %c0_i32, %c0_i32_0 : i32, i32
  }
  func.func @transform_2(%arg0: i32) -> (i32, i32) {
    %c0_i32 = arith.constant 0 : i32
    %c0_i32_0 = arith.constant 0 : i32
    %c0_i32_1 = arith.constant 0 : i32
    return %c0_i32, %c0_i32_0 : i32, i32
  }
  func.func @transform_3(%arg0: i32) -> (i32, i32) {
    %c0_i32 = arith.constant 0 : i32
    %c0_i32_0 = arith.constant 0 : i32
    %c0_i32_1 = arith.constant 0 : i32
    return %c0_i32, %c0_i32_0 : i32, i32
  }
  func.func @transform_4(%arg0: i32) -> (i32, i32) {
    %c0_i32 = arith.constant 0 : i32
    %c0_i32_0 = arith.constant 0 : i32
    %c0_i32_1 = arith.constant 0 : i32
    return %c0_i32, %c0_i32_0 : i32, i32
  }
  func.func @transform_5(%arg0: i32) -> (i32, i32) {
    %c0_i32 = arith.constant 0 : i32
    %c0_i32_0 = arith.constant 0 : i32
    %c0_i32_1 = arith.constant 0 : i32
    return %c0_i32, %c0_i32_0 : i32, i32
  }
  func.func @transform_6(%arg0: i32) -> (i32, i32) {
    %c0_i32 = arith.constant 0 : i32
    %c0_i32_0 = arith.constant 0 : i32
    %c0_i32_1 = arith.constant 0 : i32
    return %c0_i32, %c0_i32_0 : i32, i32
  }
  func.func @transform_7(%arg0: i32) -> (i32, i32) {
    %c0_i32 = arith.constant 0 : i32
    %c0_i32_0 = arith.constant 0 : i32
    %c0_i32_1 = arith.constant 0 : i32
    return %c0_i32, %c0_i32_0 : i32, i32
  }
  func.func @transform_8(%arg0: i32) -> (i32, i32) {
    %c0_i32 = arith.constant 0 : i32
    %c0_i32_0 = arith.constant 0 : i32
    %c0_i32_1 = arith.constant 0 : i32
    return %c0_i32, %c0_i32_0 : i32, i32
  }
}

</mosaic_0001>

<llo_original>
// kernel: gcn_forward.1
$region0: #{gcn_forward.1}
  #allocation0 [shape = 'u32[]', space=smem, size = 0x4, offset = 0x4, fixed_abs, tag = 'smem constant byte address 0x4 - core index']
  #allocation1 [shape = 'u32[144,128]{1,0:T(1,128)}', space=vmem, size = 0x12000, scoped, tag = 'internal scratch']
  %s0 = inlined_call_operand.vmem [shape: f32[64,64], index: 0, kind: input, shape index: {}]
  %s1 = inlined_call_operand.vmem [shape: f32[64,128], index: 1, kind: input, shape index: {}]
  %s2 = inlined_call_operand.vmem [shape: f32[128,128], index: 2, kind: input, shape index: {}]
  %s3 = inlined_call_operand.vmem [shape: f32[1,128], index: 3, kind: input, shape index: {}]
  %s4 = inlined_call_operand.vmem [shape: f32[1,128], index: 4, kind: input, shape index: {}]
  %s5 = inlined_call_operand.vmem [shape: f32[128,8], index: 5, kind: input, shape index: {}]
  %s6 = inlined_call_operand.vmem [shape: f32[1,8], index: 6, kind: input, shape index: {}]
  %s7 = inlined_call_operand.vmem [shape: f32[1,8], index: 7, kind: input, shape index: {}]
  %s8 = inlined_call_operand.vmem [shape: f32[64,8], index: 8, kind: output, shape index: {}]
  %s9 = sld [smem:[#allocation0]]
  $region42: #{gcn_forward.1} parent=0
    _
  %s11 = ssub.s32 1, %s9
  %s12 = scalar_select 0, %s11, %s9
  // Predicated region
  $region2: #{gcn_forward.1} parent=0 // pred_check
    _
  $region3: #{gcn_forward.1} parent=0 // pred_check_branch
    %14 = sbr.rel (0) target = $region5
  $region4: #{gcn_forward.1} parent=0 // pred_region
    _
  $region5: #{gcn_forward.1} parent=0 // pred_fallthru
    _
  // Predicated region
  $region6: #{gcn_forward.1} parent=0 // pred_check
    _
  $region7: #{gcn_forward.1} parent=0 // pred_check_branch
    %16 = sbr.rel (0) target = $region9
  $region8: #{gcn_forward.1} parent=0 // pred_region
    _
  $region9: #{gcn_forward.1} parent=0 // pred_fallthru
    _
  // Predicated region
  $region10: #{gcn_forward.1} parent=0 // pred_check
    _
  $region11: #{gcn_forward.1} parent=0 // pred_check_branch
    %18 = sbr.rel (0) target = $region13
  $region12: #{gcn_forward.1} parent=0 // pred_region
    _
  $region13: #{gcn_forward.1} parent=0 // pred_fallthru
    _
  // Predicated region
  $region14: #{gcn_forward.1} parent=0 // pred_check
    _
  $region15: #{gcn_forward.1} parent=0 // pred_check_branch
    %20 = sbr.rel (0) target = $region17
  $region16: #{gcn_forward.1} parent=0 // pred_region
    _
  $region17: #{gcn_forward.1} parent=0 // pred_fallthru
    _
  // Predicated region
  $region18: #{gcn_forward.1} parent=0 // pred_check
    _
  $region19: #{gcn_forward.1} parent=0 // pred_check_branch
    %22 = sbr.rel (0) target = $region21
  $region20: #{gcn_forward.1} parent=0 // pred_region
    _
  $region21: #{gcn_forward.1} parent=0 // pred_fallthru
    _
  // Predicated region
  $region22: #{gcn_forward.1} parent=0 // pred_check
    _
  $region23: #{gcn_forward.1} parent=0 // pred_check_branch
    %24 = sbr.rel (0) target = $region25
  $region24: #{gcn_forward.1} parent=0 // pred_region
    _
  $region25: #{gcn_forward.1} parent=0 // pred_fallthru
    _
  // Predicated region
  $region26: #{gcn_forward.1} parent=0 // pred_check
    _
  $region27: #{gcn_forward.1} parent=0 // pred_check_branch
    %26 = sbr.rel (0) target = $region29
  $region28: #{gcn_forward.1} parent=0 // pred_region
    _
  $region29: #{gcn_forward.1} parent=0 // pred_fallthru
    _
  // Predicated region
  $region30: #{gcn_forward.1} parent=0 // pred_check
    _
  $region31: #{gcn_forward.1} parent=0 // pred_check_branch
    %28 = sbr.rel (0) target = $region33
  $region32: #{gcn_forward.1} parent=0 // pred_region
    _
  $region33: #{gcn_forward.1} parent=0 // pred_fallthru
    _
  %v29 = vld [vmem:[%s0] sm:$0xff]
  %v30 = vld [vmem:[%s0 + $0x8] sm:$0xff]
  %v31 = vld [vmem:[%s0 + $0x10] sm:$0xff]
  %v32 = vld [vmem:[%s0 + $0x18] sm:$0xff]
  %v33 = vld [vmem:[%s0 + $0x20] sm:$0xff]
  %v34 = vld [vmem:[%s0 + $0x28] sm:$0xff]
  %v35 = vld [vmem:[%s0 + $0x30] sm:$0xff]
  %v36 = vld [vmem:[%s0 + $0x38] sm:$0xff]
  %v37 = vld [vmem:[%s1] sm:$0xff]
  %v38 = vld [vmem:[%s1 + $0x8] sm:$0xff]
  %v39 = vld [vmem:[%s1 + $0x10] sm:$0xff]
  %v40 = vld [vmem:[%s1 + $0x18] sm:$0xff]
  %v41 = vld [vmem:[%s1 + $0x20] sm:$0xff]
  %v42 = vld [vmem:[%s1 + $0x28] sm:$0xff]
  %v43 = vld [vmem:[%s1 + $0x30] sm:$0xff]
  %v44 = vld [vmem:[%s1 + $0x38] sm:$0xff]
  %v45 = vld [vmem:[%s2] sm:$0xff]
  %v46 = vld [vmem:[%s2 + $0x8] sm:$0xff]
  %v47 = vld [vmem:[%s2 + $0x10] sm:$0xff]
  %v48 = vld [vmem:[%s2 + $0x18] sm:$0xff]
  %v49 = vld [vmem:[%s2 + $0x20] sm:$0xff]
  %v50 = vld [vmem:[%s2 + $0x28] sm:$0xff]
  %v51 = vld [vmem:[%s2 + $0x30] sm:$0xff]
  %v52 = vld [vmem:[%s2 + $0x38] sm:$0xff]
  %v53 = vld [vmem:[%s2 + $0x40] sm:$0xff]
  %v54 = vld [vmem:[%s2 + $0x48] sm:$0xff]
  %v55 = vld [vmem:[%s2 + $0x50] sm:$0xff]
  %v56 = vld [vmem:[%s2 + $0x58] sm:$0xff]
  %v57 = vld [vmem:[%s2 + $0x60] sm:$0xff]
  %v58 = vld [vmem:[%s2 + $0x68] sm:$0xff]
  %v59 = vld [vmem:[%s2 + $0x70] sm:$0xff]
  %v60 = vld [vmem:[%s2 + $0x78] sm:$0xff]
  %61 = vmatprep.subr.mxu0 0.0
  %62 = vmatpush1.msra.mxu0 %v60
  %63 = vmatprep.subr.mxu0 0.0
  %64 = vmatpush1.msra.mxu0 %v59
  %65 = vmatprep.subr.mxu0 0.0
  %66 = vmatpush1.msra.mxu0 %v58
  %67 = vmatprep.subr.mxu0 0.0
  %68 = vmatpush1.msra.mxu0 %v57
  %69 = vmatprep.subr.mxu0 0.0
  %70 = vmatpush1.msra.mxu0 %v56
  %71 = vmatprep.subr.mxu0 0.0
  %72 = vmatpush1.msra.mxu0 %v55
  %73 = vmatprep.subr.mxu0 0.0
  %74 = vmatpush1.msra.mxu0 %v54
  %75 = vmatprep.subr.mxu0 0.0
  %76 = vmatpush1.msra.mxu0 %v53
  %77 = vmatprep.subr.mxu0 0.0
  %78 = vmatpush1.msra.mxu0 %v52
  %79 = vmatprep.subr.mxu0 0.0
  %80 = vmatpush1.msra.mxu0 %v51
  %81 = vmatprep.subr.mxu0 0.0
  %82 = vmatpush1.msra.mxu0 %v50
  %83 = vmatprep.subr.mxu0 0.0
  %84 = vmatpush1.msra.mxu0 %v49
  %85 = vmatprep.subr.mxu0 0.0
  %86 = vmatpush1.msra.mxu0 %v48
  %87 = vmatprep.subr.mxu0 0.0
  %88 = vmatpush1.msra.mxu0 %v47
  %89 = vmatprep.subr.mxu0 0.0
  %90 = vmatpush1.msra.mxu0 %v46
  %91 = vmatprep.subr.mxu0 0.0
  %92 = vmatpush1.msra.mxu0 %v45
  %93 = vmatprep.subr.mxu0 0.0
  %94 = vmatpush2.msra.mxu0 0.0
  %95 = vmatprep.subr.mxu0 0.0
  %96 = vmatpush2.msra.mxu0 0.0
  %97 = vmatprep.subr.mxu0 0.0
  %98 = vmatpush2.msra.mxu0 0.0
  %99 = vmatprep.subr.mxu0 0.0
  %100 = vmatpush2.msra.mxu0 0.0
  %101 = vmatprep.subr.mxu0 0.0
  %102 = vmatpush2.msra.mxu0 0.0
  %103 = vmatprep.subr.mxu0 0.0
  %104 = vmatpush2.msra.mxu0 0.0
  %105 = vmatprep.subr.mxu0 0.0
  %106 = vmatpush2.msra.mxu0 0.0
  %107 = vmatprep.subr.mxu0 0.0
  %108 = vmatpush2.msra.mxu0 0.0
  %109 = vmatprep.subr.mxu0 0.0
  %110 = vmatpush2.msra.mxu0 0.0
  %111 = vmatprep.subr.mxu0 0.0
  %112 = vmatpush2.msra.mxu0 0.0
  %113 = vmatprep.subr.mxu0 0.0
  %114 = vmatpush2.msra.mxu0 0.0
  %115 = vmatprep.subr.mxu0 0.0
  %116 = vmatpush2.msra.mxu0 0.0
  %117 = vmatprep.subr.mxu0 0.0
  %118 = vmatpush2.msra.mxu0 0.0
  %119 = vmatprep.subr.mxu0 0.0
  %120 = vmatpush2.msra.mxu0 0.0
  %121 = vmatprep.subr.mxu0 0.0
  %122 = vmatpush2.msra.mxu0 0.0
  %123 = vmatprep.subr.mxu0 0.0
  %124 = vmatpush2.msra.mxu0 0.0
  %125 = vmatprep.mubr.f32.mxu0 0.0
  %126 = vmatmul.mubr.f32.gmra.mxu0 %v37
  %v127 = vpop.f32.mrf.mxu0
  %v128 = vadd.f32 0.0, %v127
  %v129 = vpop.f32.mrf.mxu0
  %130 = vmatprep.mubr.f32.mxu0 0.0
  %131 = vmatmul.mubr.f32.gmra.mxu0 %v38
  %v132 = vpop.f32.mrf.mxu0
  %v133 = vadd.f32 0.0, %v132
  %v134 = vpop.f32.mrf.mxu0
  %135 = vmatprep.mubr.f32.mxu0 0.0
  %136 = vmatmul.mubr.f32.gmra.mxu0 %v39
  %v137 = vpop.f32.mrf.mxu0
  %v138 = vadd.f32 0.0, %v137
  %v139 = vpop.f32.mrf.mxu0
  %140 = vmatprep.mubr.f32.mxu0 0.0
  %141 = vmatmul.mubr.f32.gmra.mxu0 %v40
  %v142 = vpop.f32.mrf.mxu0
  %v143 = vadd.f32 0.0, %v142
  %v144 = vpop.f32.mrf.mxu0
  %145 = vmatprep.mubr.f32.mxu0 0.0
  %146 = vmatmul.mubr.f32.gmra.mxu0 %v41
  %v147 = vpop.f32.mrf.mxu0
  %v148 = vadd.f32 0.0, %v147
  %v149 = vpop.f32.mrf.mxu0
  %150 = vmatprep.mubr.f32.mxu0 0.0
  %151 = vmatmul.mubr.f32.gmra.mxu0 %v42
  %v152 = vpop.f32.mrf.mxu0
  %v153 = vadd.f32 0.0, %v152
  %v154 = vpop.f32.mrf.mxu0
  %155 = vmatprep.mubr.f32.mxu0 0.0
  %156 = vmatmul.mubr.f32.gmra.mxu0 %v43
  %v157 = vpop.f32.mrf.mxu0
  %v158 = vadd.f32 0.0, %v157
  %v159 = vpop.f32.mrf.mxu0
  %160 = vmatprep.mubr.f32.mxu0 0.0
  %161 = vmatmul.mubr.f32.gmra.mxu0 %v44
  %v162 = vpop.f32.mrf.mxu0
  %v163 = vadd.f32 0.0, %v162
  %v164 = vpop.f32.mrf.mxu0
  %165 = vdwg.mxu0
  %vm166 = vcmask 523264
  %v168 = vsel %vm166, %v29, 0
  %v171 = vsel %vm166, %v30, 0
  %v174 = vsel %vm166, %v31, 0
  %v177 = vsel %vm166, %v32, 0
  %v180 = vsel %vm166, %v33, 0
  %v183 = vsel %vm166, %v34, 0
  %v186 = vsel %vm166, %v35, 0
  %v189 = vsel %vm166, %v36, 0
  %191 = vmatprep.subr.mxu0 0.0
  %192 = vmatpush1.msra.mxu0 0.0
  %193 = vmatprep.subr.mxu0 0.0
  %194 = vmatpush1.msra.mxu0 0.0
  %195 = vmatprep.subr.mxu0 0.0
  %196 = vmatpush1.msra.mxu0 0.0
  %197 = vmatprep.subr.mxu0 0.0
  %198 = vmatpush1.msra.mxu0 0.0
  %199 = vmatprep.subr.mxu0 0.0
  %200 = vmatpush1.msra.mxu0 0.0
  %201 = vmatprep.subr.mxu0 0.0
  %202 = vmatpush1.msra.mxu0 0.0
  %203 = vmatprep.subr.mxu0 0.0
  %204 = vmatpush1.msra.mxu0 0.0
  %205 = vmatprep.subr.mxu0 0.0
  %206 = vmatpush1.msra.mxu0 0.0
  %207 = vmatprep.subr.mxu0 0.0
  %208 = vmatpush1.msra.mxu0 %v163
  %209 = vmatprep.subr.mxu0 0.0
  %210 = vmatpush1.msra.mxu0 %v158
  %211 = vmatprep.subr.mxu0 0.0
  %212 = vmatpush1.msra.mxu0 %v153
  %213 = vmatprep.subr.mxu0 0.0
  %214 = vmatpush1.msra.mxu0 %v148
  %215 = vmatprep.subr.mxu0 0.0
  %216 = vmatpush1.msra.mxu0 %v143
  %217 = vmatprep.subr.mxu0 0.0
  %218 = vmatpush1.msra.mxu0 %v138
  %219 = vmatprep.subr.mxu0 0.0
  %220 = vmatpush1.msra.mxu0 %v133
  %221 = vmatprep.subr.mxu0 0.0
  %222 = vmatpush1.msra.mxu0 %v128
  %223 = vmatprep.subr.mxu0 0.0
  %224 = vmatpush2.msra.mxu0 0.0
  %225 = vmatprep.subr.mxu0 0.0
  %226 = vmatpush2.msra.mxu0 0.0
  %227 = vmatprep.subr.mxu0 0.0
  %228 = vmatpush2.msra.mxu0 0.0
  %229 = vmatprep.subr.mxu0 0.0
  %230 = vmatpush2.msra.mxu0 0.0
  %231 = vmatprep.subr.mxu0 0.0
  %232 = vmatpush2.msra.mxu0 0.0
  %233 = vmatprep.subr.mxu0 0.0
  %234 = vmatpush2.msra.mxu0 0.0
  %235 = vmatprep.subr.mxu0 0.0
  %236 = vmatpush2.msra.mxu0 0.0
  %237 = vmatprep.subr.mxu0 0.0
  %238 = vmatpush2.msra.mxu0 0.0
  %239 = vmatprep.subr.mxu0 0.0
  %240 = vmatpush2.msra.mxu0 0.0
  %241 = vmatprep.subr.mxu0 0.0
  %242 = vmatpush2.msra.mxu0 0.0
  %243 = vmatprep.subr.mxu0 0.0
  %244 = vmatpush2.msra.mxu0 0.0
  %245 = vmatprep.subr.mxu0 0.0
  %246 = vmatpush2.msra.mxu0 0.0
  %247 = vmatprep.subr.mxu0 0.0
  %248 = vmatpush2.msra.mxu0 0.0
  %249 = vmatprep.subr.mxu0 0.0
  %250 = vmatpush2.msra.mxu0 0.0
  %251 = vmatprep.subr.mxu0 0.0
  %252 = vmatpush2.msra.mxu0 0.0
  %253 = vmatprep.subr.mxu0 0.0
  %254 = vmatpush2.msra.mxu0 0.0
  %255 = vmatprep.mubr.f32.mxu0 0.0
  %256 = vmatmul.mubr.f32.gmra.mxu0 %v168
  %v257 = vpop.f32.mrf.mxu0
  %v258 = vadd.f32 0.0, %v257
  %v259 = vpop.f32.mrf.mxu0
  %260 = vmatprep.mubr.f32.mxu0 0.0
  %261 = vmatmul.mubr.f32.gmra.mxu0 %v171
  %v262 = vpop.f32.mrf.mxu0
  %v263 = vadd.f32 0.0, %v262
  %v264 = vpop.f32.mrf.mxu0
  %265 = vmatprep.mubr.f32.mxu0 0.0
  %266 = vmatmul.mubr.f32.gmra.mxu0 %v174
  %v267 = vpop.f32.mrf.mxu0
  %v268 = vadd.f32 0.0, %v267
  %v269 = vpop.f32.mrf.mxu0
  %270 = vmatprep.mubr.f32.mxu0 0.0
  %271 = vmatmul.mubr.f32.gmra.mxu0 %v177
  %v272 = vpop.f32.mrf.mxu0
  %v273 = vadd.f32 0.0, %v272
  %v274 = vpop.f32.mrf.mxu0
  %275 = vmatprep.mubr.f32.mxu0 0.0
  %276 = vmatmul.mubr.f32.gmra.mxu0 %v180
  %v277 = vpop.f32.mrf.mxu0
  %v278 = vadd.f32 0.0, %v277
  %v279 = vpop.f32.mrf.mxu0
  %280 = vmatprep.mubr.f32.mxu0 0.0
  %281 = vmatmul.mubr.f32.gmra.mxu0 %v183
  %v282 = vpop.f32.mrf.mxu0
  %v283 = vadd.f32 0.0, %v282
  %v284 = vpop.f32.mrf.mxu0
  %285 = vmatprep.mubr.f32.mxu0 0.0
  %286 = vmatmul.mubr.f32.gmra.mxu0 %v186
  %v287 = vpop.f32.mrf.mxu0
  %v288 = vadd.f32 0.0, %v287
  %v289 = vpop.f32.mrf.mxu0
  %290 = vmatprep.mubr.f32.mxu0 0.0
  %291 = vmatmul.mubr.f32.gmra.mxu0 %v189
  %v292 = vpop.f32.mrf.mxu0
  %v293 = vadd.f32 0.0, %v292
  %v294 = vpop.f32.mrf.mxu0
  %295 = vdwg.mxu0
  %v296 = vadd.f32 %v258, %v263
  %v297 = vadd.f32 %v296, %v268
  %v298 = vadd.f32 %v297, %v273
  %v299 = vadd.f32 %v298, %v278
  %v300 = vadd.f32 %v299, %v283
  %v301 = vadd.f32 %v300, %v288
  %v302 = vadd.f32 %v301, %v293
  %v303 = vrot.slane %v302, 4
  %v304 = vadd.f32 %v302, %v303
  %v305 = vrot.slane %v304, 2
  %v306 = vadd.f32 %v304, %v305
  %v307 = vrot.slane %v306, 1
  %v308 = vadd.f32 %v306, %v307
  %v309 = vmul.f32 %v308, 0.015625
  %v310 = vmul.f32 %v258, %v258
  %v311 = vmul.f32 %v263, %v263
  %v312 = vmul.f32 %v268, %v268
  %v313 = vmul.f32 %v273, %v273
  %v314 = vmul.f32 %v278, %v278
  %v315 = vmul.f32 %v283, %v283
  %v316 = vmul.f32 %v288, %v288
  %v317 = vmul.f32 %v293, %v293
  %v318 = vadd.f32 %v310, %v311
  %v319 = vadd.f32 %v318, %v312
  %v320 = vadd.f32 %v319, %v313
  %v321 = vadd.f32 %v320, %v314
  %v322 = vadd.f32 %v321, %v315
  %v323 = vadd.f32 %v322, %v316
  %v324 = vadd.f32 %v323, %v317
  %v325 = vrot.slane %v324, 4
  %v326 = vadd.f32 %v324, %v325
  %v327 = vrot.slane %v326, 2
  %v328 = vadd.f32 %v326, %v327
  %v329 = vrot.slane %v328, 1
  %v330 = vadd.f32 %v328, %v329
  %v331 = vmul.f32 %v330, 0.015625
  %v332 = vmul.f32 %v309, %v309
  %v333 = vsub.f32 %v331, %v332
  %v334 = vmax.f32 %v333, 0.0
  %v335 = vsub.f32 %v258, %v309
  %v336 = vsub.f32 %v263, %v309
  %v337 = vsub.f32 %v268, %v309
  %v338 = vsub.f32 %v273, %v309
  %v339 = vsub.f32 %v278, %v309
  %v340 = vsub.f32 %v283, %v309
  %v341 = vsub.f32 %v288, %v309
  %v342 = vsub.f32 %v293, %v309
  %v343 = vadd.f32 %v334, 1e-05
  %v344 = vrsqrt.pop %v343
  %v345 = vld [vmem:[%s3] sm:$0x1]
  %v346 = vmul.f32 %v344, %v345
  %v347 = vlaneseq
  %v348 = vshrl.u32 %v347, 7
  %v349 = vsub.s32 0, %v348
  %v350 = vrot.slane %v346, %v349
  %v351 = vmul.f32 %v335, %v350
  %v352 = vmul.f32 %v336, %v350
  %v353 = vmul.f32 %v337, %v350
  %v354 = vmul.f32 %v338, %v350
  %v355 = vmul.f32 %v339, %v350
  %v356 = vmul.f32 %v340, %v350
  %v357 = vmul.f32 %v341, %v350
  %v358 = vmul.f32 %v342, %v350
  %v359 = vld [vmem:[%s4] sm:$0x1]
  %v361 = vlaneseq
  %v362 = vshrl.u32 %v361, 7
  %v363 = vsub.s32 0, %v362
  %v364 = vrot.slane %v359, %v363
  %v366 = vadd.f32 %v351, %v364
  %v367 = vadd.f32 %v352, %v364
  %v368 = vadd.f32 %v353, %v364
  %v369 = vadd.f32 %v354, %v364
  %v370 = vadd.f32 %v355, %v364
  %v371 = vadd.f32 %v356, %v364
  %v372 = vadd.f32 %v357, %v364
  %v373 = vadd.f32 %v358, %v364
  %v374 = vmax.f32 %v366, 0.0
  %v375 = vmax.f32 %v367, 0.0
  %v376 = vmax.f32 %v368, 0.0
  %v377 = vmax.f32 %v369, 0.0
  %v378 = vmax.f32 %v370, 0.0
  %v379 = vmax.f32 %v371, 0.0
  %v380 = vmax.f32 %v372, 0.0
  %v381 = vmax.f32 %v373, 0.0
  %v382 = vld [vmem:[%s5] sm:$0xff]
  %v383 = vld [vmem:[%s5 + $0x8] sm:$0xff]
  %v384 = vld [vmem:[%s5 + $0x10] sm:$0xff]
  %v385 = vld [vmem:[%s5 + $0x18] sm:$0xff]
  %v386 = vld [vmem:[%s5 + $0x20] sm:$0xff]
  %v387 = vld [vmem:[%s5 + $0x28] sm:$0xff]
  %v388 = vld [vmem:[%s5 + $0x30] sm:$0xff]
  %v389 = vld [vmem:[%s5 + $0x38] sm:$0xff]
  %v390 = vld [vmem:[%s5 + $0x40] sm:$0xff]
  %v391 = vld [vmem:[%s5 + $0x48] sm:$0xff]
  %v392 = vld [vmem:[%s5 + $0x50] sm:$0xff]
  %v393 = vld [vmem:[%s5 + $0x58] sm:$0xff]
  %v394 = vld [vmem:[%s5 + $0x60] sm:$0xff]
  %v395 = vld [vmem:[%s5 + $0x68] sm:$0xff]
  %v396 = vld [vmem:[%s5 + $0x70] sm:$0xff]
  %v397 = vld [vmem:[%s5 + $0x78] sm:$0xff]
  %398 = vmatprep.subr.mxu0 0.0
  %399 = vmatpush1.msra.mxu0 %v397
  %400 = vmatprep.subr.mxu0 0.0
  %401 = vmatpush1.msra.mxu0 %v396
  %402 = vmatprep.subr.mxu0 0.0
  %403 = vmatpush1.msra.mxu0 %v395
  %404 = vmatprep.subr.mxu0 0.0
  %405 = vmatpush1.msra.mxu0 %v394
  %406 = vmatprep.subr.mxu0 0.0
  %407 = vmatpush1.msra.mxu0 %v393
  %408 = vmatprep.subr.mxu0 0.0
  %409 = vmatpush1.msra.mxu0 %v392
  %410 = vmatprep.subr.mxu0 0.0
  %411 = vmatpush1.msra.mxu0 %v391
  %412 = vmatprep.subr.mxu0 0.0
  %413 = vmatpush1.msra.mxu0 %v390
  %414 = vmatprep.subr.mxu0 0.0
  %415 = vmatpush1.msra.mxu0 %v389
  %416 = vmatprep.subr.mxu0 0.0
  %417 = vmatpush1.msra.mxu0 %v388
  %418 = vmatprep.subr.mxu0 0.0
  %419 = vmatpush1.msra.mxu0 %v387
  %420 = vmatprep.subr.mxu0 0.0
  %421 = vmatpush1.msra.mxu0 %v386
  %422 = vmatprep.subr.mxu0 0.0
  %423 = vmatpush1.msra.mxu0 %v385
  %424 = vmatprep.subr.mxu0 0.0
  %425 = vmatpush1.msra.mxu0 %v384
  %426 = vmatprep.subr.mxu0 0.0
  %427 = vmatpush1.msra.mxu0 %v383
  %428 = vmatprep.subr.mxu0 0.0
  %429 = vmatpush1.msra.mxu0 %v382
  %430 = vmatprep.subr.mxu0 0.0
  %431 = vmatpush2.msra.mxu0 0.0
  %432 = vmatprep.subr.mxu0 0.0
  %433 = vmatpush2.msra.mxu0 0.0
  %434 = vmatprep.subr.mxu0 0.0
  %435 = vmatpush2.msra.mxu0 0.0
  %436 = vmatprep.subr.mxu0 0.0
  %437 = vmatpush2.msra.mxu0 0.0
  %438 = vmatprep.subr.mxu0 0.0
  %439 = vmatpush2.msra.mxu0 0.0
  %440 = vmatprep.subr.mxu0 0.0
  %441 = vmatpush2.msra.mxu0 0.0
  %442 = vmatprep.subr.mxu0 0.0
  %443 = vmatpush2.msra.mxu0 0.0
  %444 = vmatprep.subr.mxu0 0.0
  %445 = vmatpush2.msra.mxu0 0.0
  %446 = vmatprep.subr.mxu0 0.0
  %447 = vmatpush2.msra.mxu0 0.0
  %448 = vmatprep.subr.mxu0 0.0
  %449 = vmatpush2.msra.mxu0 0.0
  %450 = vmatprep.subr.mxu0 0.0
  %451 = vmatpush2.msra.mxu0 0.0
  %452 = vmatprep.subr.mxu0 0.0
  %453 = vmatpush2.msra.mxu0 0.0
  %454 = vmatprep.subr.mxu0 0.0
  %455 = vmatpush2.msra.mxu0 0.0
  %456 = vmatprep.subr.mxu0 0.0
  %457 = vmatpush2.msra.mxu0 0.0
  %458 = vmatprep.subr.mxu0 0.0
  %459 = vmatpush2.msra.mxu0 0.0
  %460 = vmatprep.subr.mxu0 0.0
  %461 = vmatpush2.msra.mxu0 0.0
  %462 = vmatprep.mubr.f32.mxu0 0.0
  %463 = vmatmul.mubr.f32.gmra.mxu0 %v374
  %v464 = vpop.f32.mrf.mxu0
  %v465 = vadd.f32 0.0, %v464
  %v466 = vpop.f32.mrf.mxu0
  %467 = vmatprep.mubr.f32.mxu0 0.0
  %468 = vmatmul.mubr.f32.gmra.mxu0 %v375
  %v469 = vpop.f32.mrf.mxu0
  %v470 = vadd.f32 0.0, %v469
  %v471 = vpop.f32.mrf.mxu0
  %472 = vmatprep.mubr.f32.mxu0 0.0
  %473 = vmatmul.mubr.f32.gmra.mxu0 %v376
  %v474 = vpop.f32.mrf.mxu0
  %v475 = vadd.f32 0.0, %v474
  %v476 = vpop.f32.mrf.mxu0
  %477 = vmatprep.mubr.f32.mxu0 0.0
  %478 = vmatmul.mubr.f32.gmra.mxu0 %v377
  %v479 = vpop.f32.mrf.mxu0
  %v480 = vadd.f32 0.0, %v479
  %v481 = vpop.f32.mrf.mxu0
  %482 = vmatprep.mubr.f32.mxu0 0.0
  %483 = vmatmul.mubr.f32.gmra.mxu0 %v378
  %v484 = vpop.f32.mrf.mxu0
  %v485 = vadd.f32 0.0, %v484
  %v486 = vpop.f32.mrf.mxu0
  %487 = vmatprep.mubr.f32.mxu0 0.0
  %488 = vmatmul.mubr.f32.gmra.mxu0 %v379
  %v489 = vpop.f32.mrf.mxu0
  %v490 = vadd.f32 0.0, %v489
  %v491 = vpop.f32.mrf.mxu0
  %492 = vmatprep.mubr.f32.mxu0 0.0
  %493 = vmatmul.mubr.f32.gmra.mxu0 %v380
  %v494 = vpop.f32.mrf.mxu0
  %v495 = vadd.f32 0.0, %v494
  %v496 = vpop.f32.mrf.mxu0
  %497 = vmatprep.mubr.f32.mxu0 0.0
  %498 = vmatmul.mubr.f32.gmra.mxu0 %v381
  %v499 = vpop.f32.mrf.mxu0
  %v500 = vadd.f32 0.0, %v499
  %v501 = vpop.f32.mrf.mxu0
  %502 = vdwg.mxu0
  %503 = vmatprep.subr.mxu0 0.0
  %504 = vmatpush1.msra.mxu0 0.0
  %505 = vmatprep.subr.mxu0 0.0
  %506 = vmatpush1.msra.mxu0 0.0
  %507 = vmatprep.subr.mxu0 0.0
  %508 = vmatpush1.msra.mxu0 0.0
  %509 = vmatprep.subr.mxu0 0.0
  %510 = vmatpush1.msra.mxu0 0.0
  %511 = vmatprep.subr.mxu0 0.0
  %512 = vmatpush1.msra.mxu0 0.0
  %513 = vmatprep.subr.mxu0 0.0
  %514 = vmatpush1.msra.mxu0 0.0
  %515 = vmatprep.subr.mxu0 0.0
  %516 = vmatpush1.msra.mxu0 0.0
  %517 = vmatprep.subr.mxu0 0.0
  %518 = vmatpush1.msra.mxu0 0.0
  %519 = vmatprep.subr.mxu0 0.0
  %520 = vmatpush1.msra.mxu0 %v500
  %521 = vmatprep.subr.mxu0 0.0
  %522 = vmatpush1.msra.mxu0 %v495
  %523 = vmatprep.subr.mxu0 0.0
  %524 = vmatpush1.msra.mxu0 %v490
  %525 = vmatprep.subr.mxu0 0.0
  %526 = vmatpush1.msra.mxu0 %v485
  %527 = vmatprep.subr.mxu0 0.0
  %528 = vmatpush1.msra.mxu0 %v480
  %529 = vmatprep.subr.mxu0 0.0
  %530 = vmatpush1.msra.mxu0 %v475
  %531 = vmatprep.subr.mxu0 0.0
  %532 = vmatpush1.msra.mxu0 %v470
  %533 = vmatprep.subr.mxu0 0.0
  %534 = vmatpush1.msra.mxu0 %v465
  %535 = vmatprep.subr.mxu0 0.0
  %536 = vmatpush2.msra.mxu0 0.0
  %537 = vmatprep.subr.mxu0 0.0
  %538 = vmatpush2.msra.mxu0 0.0
  %539 = vmatprep.subr.mxu0 0.0
  %540 = vmatpush2.msra.mxu0 0.0
  %541 = vmatprep.subr.mxu0 0.0
  %542 = vmatpush2.msra.mxu0 0.0
  %543 = vmatprep.subr.mxu0 0.0
  %544 = vmatpush2.msra.mxu0 0.0
  %545 = vmatprep.subr.mxu0 0.0
  %546 = vmatpush2.msra.mxu0 0.0
  %547 = vmatprep.subr.mxu0 0.0
  %548 = vmatpush2.msra.mxu0 0.0
  %549 = vmatprep.subr.mxu0 0.0
  %550 = vmatpush2.msra.mxu0 0.0
  %551 = vmatprep.subr.mxu0 0.0
  %552 = vmatpush2.msra.mxu0 0.0
  %553 = vmatprep.subr.mxu0 0.0
  %554 = vmatpush2.msra.mxu0 0.0
  %555 = vmatprep.subr.mxu0 0.0
  %556 = vmatpush2.msra.mxu0 0.0
  %557 = vmatprep.subr.mxu0 0.0
  %558 = vmatpush2.msra.mxu0 0.0
  %559 = vmatprep.subr.mxu0 0.0
  %560 = vmatpush2.msra.mxu0 0.0
  %561 = vmatprep.subr.mxu0 0.0
  %562 = vmatpush2.msra.mxu0 0.0
  %563 = vmatprep.subr.mxu0 0.0
  %564 = vmatpush2.msra.mxu0 0.0
  %565 = vmatprep.subr.mxu0 0.0
  %566 = vmatpush2.msra.mxu0 0.0
  %567 = vmatprep.mubr.f32.mxu0 0.0
  %568 = vmatmul.mubr.f32.gmra.mxu0 %v168
  %v569 = vpop.f32.mrf.mxu0
  %v570 = vadd.f32 0.0, %v569
  %v571 = vpop.f32.mrf.mxu0
  %572 = vmatprep.mubr.f32.mxu0 0.0
  %573 = vmatmul.mubr.f32.gmra.mxu0 %v171
  %v574 = vpop.f32.mrf.mxu0
  %v575 = vadd.f32 0.0, %v574
  %v576 = vpop.f32.mrf.mxu0
  %577 = vmatprep.mubr.f32.mxu0 0.0
  %578 = vmatmul.mubr.f32.gmra.mxu0 %v174
  %v579 = vpop.f32.mrf.mxu0
  %v580 = vadd.f32 0.0, %v579
  %v581 = vpop.f32.mrf.mxu0
  %582 = vmatprep.mubr.f32.mxu0 0.0
  %583 = vmatmul.mubr.f32.gmra.mxu0 %v177
  %v584 = vpop.f32.mrf.mxu0
  %v585 = vadd.f32 0.0, %v584
  %v586 = vpop.f32.mrf.mxu0
  %587 = vmatprep.mubr.f32.mxu0 0.0
  %588 = vmatmul.mubr.f32.gmra.mxu0 %v180
  %v589 = vpop.f32.mrf.mxu0
  %v590 = vadd.f32 0.0, %v589
  %v591 = vpop.f32.mrf.mxu0
  %592 = vmatprep.mubr.f32.mxu0 0.0
  %593 = vmatmul.mubr.f32.gmra.mxu0 %v183
  %v594 = vpop.f32.mrf.mxu0
  %v595 = vadd.f32 0.0, %v594
  %v596 = vpop.f32.mrf.mxu0
  %597 = vmatprep.mubr.f32.mxu0 0.0
  %598 = vmatmul.mubr.f32.gmra.mxu0 %v186
  %v599 = vpop.f32.mrf.mxu0
  %v600 = vadd.f32 0.0, %v599
  %v601 = vpop.f32.mrf.mxu0
  %602 = vmatprep.mubr.f32.mxu0 0.0
  %603 = vmatmul.mubr.f32.gmra.mxu0 %v189
  %v604 = vpop.f32.mrf.mxu0
  %v605 = vadd.f32 0.0, %v604
  %v606 = vpop.f32.mrf.mxu0
  %607 = vdwg.mxu0
  %vm608 = vcmask 64512
  %v609 = vsel %vm608, %v570, 0.0
  %v610 = vsel %vm608, %v575, 0.0
  %v611 = vadd.f32 %v609, %v610
  %v612 = vsel %vm608, %v580, 0.0
  %v613 = vadd.f32 %v611, %v612
  %v614 = vsel %vm608, %v585, 0.0
  %v615 = vadd.f32 %v613, %v614
  %v616 = vsel %vm608, %v590, 0.0
  %v617 = vadd.f32 %v615, %v616
  %v618 = vsel %vm608, %v595, 0.0
  %v619 = vadd.f32 %v617, %v618
  %v620 = vsel %vm608, %v600, 0.0
  %v621 = vadd.f32 %v619, %v620
  %v622 = vsel %vm608, %v605, 0.0
  %v623 = vadd.f32 %v621, %v622
  %v624 = vrot.slane %v623, 4
  %v625 = vadd.f32 %v623, %v624
  %v626 = vrot.slane %v625, 2
  %v627 = vadd.f32 %v625, %v626
  %v628 = vrot.slane %v627, 1
  %v629 = vadd.f32 %v627, %v628
  %v630 = vmul.f32 %v629, 0.015625
  %v631 = vmul.f32 %v570, %v570
  %v632 = vmul.f32 %v575, %v575
  %v633 = vmul.f32 %v580, %v580
  %v634 = vmul.f32 %v585, %v585
  %v635 = vmul.f32 %v590, %v590
  %v636 = vmul.f32 %v595, %v595
  %v637 = vmul.f32 %v600, %v600
  %v638 = vmul.f32 %v605, %v605
  %v639 = vsel %vm608, %v631, 0.0
  %v640 = vsel %vm608, %v632, 0.0
  %v641 = vadd.f32 %v639, %v640
  %v642 = vsel %vm608, %v633, 0.0
  %v643 = vadd.f32 %v641, %v642
  %v644 = vsel %vm608, %v634, 0.0
  %v645 = vadd.f32 %v643, %v644
  %v646 = vsel %vm608, %v635, 0.0
  %v647 = vadd.f32 %v645, %v646
  %v648 = vsel %vm608, %v636, 0.0
  %v649 = vadd.f32 %v647, %v648
  %v650 = vsel %vm608, %v637, 0.0
  %v651 = vadd.f32 %v649, %v650
  %v652 = vsel %vm608, %v638, 0.0
  %v653 = vadd.f32 %v651, %v652
  %v654 = vrot.slane %v653, 4
  %v655 = vadd.f32 %v653, %v654
  %v656 = vrot.slane %v655, 2
  %v657 = vadd.f32 %v655, %v656
  %v658 = vrot.slane %v657, 1
  %v659 = vadd.f32 %v657, %v658
  %v660 = vmul.f32 %v659, 0.015625
  %v661 = vmul.f32 %v630, %v630
  %v662 = vsub.f32 %v660, %v661
  %v663 = vmax.f32 %v662, 0.0
  %v664 = vsub.f32 %v570, %v630
  %v665 = vsub.f32 %v575, %v630
  %v666 = vsub.f32 %v580, %v630
  %v667 = vsub.f32 %v585, %v630
  %v668 = vsub.f32 %v590, %v630
  %v669 = vsub.f32 %v595, %v630
  %v670 = vsub.f32 %v600, %v630
  %v671 = vsub.f32 %v605, %v630
  %v672 = vadd.f32 %v663, 1e-05
  %v673 = vrsqrt.pop %v672
  %v674 = vld [vmem:[%s6] sm:$0x1]
  %v675 = vmul.f32 %v673, %v674
  %v676 = vlaneseq
  %v677 = vshrl.u32 %v676, 7
  %v678 = vsub.s32 0, %v677
  %v679 = vrot.slane %v675, %v678
  %v680 = vmul.f32 %v664, %v679
  %v681 = vmul.f32 %v665, %v679
  %v682 = vmul.f32 %v666, %v679
  %v683 = vmul.f32 %v667, %v679
  %v684 = vmul.f32 %v668, %v679
  %v685 = vmul.f32 %v669, %v679
  %v686 = vmul.f32 %v670, %v679
  %v687 = vmul.f32 %v671, %v679
  %v688 = vld [vmem:[%s7] sm:$0x1]
  %v690 = vlaneseq
  %v691 = vshrl.u32 %v690, 7
  %v692 = vsub.s32 0, %v691
  %v693 = vrot.slane %v688, %v692
  %v695 = vadd.f32 %v680, %v693
  %v696 = vadd.f32 %v681, %v693
  %v697 = vadd.f32 %v682, %v693
  %v698 = vadd.f32 %v683, %v693
  %v699 = vadd.f32 %v684, %v693
  %v700 = vadd.f32 %v685, %v693
  %v701 = vadd.f32 %v686, %v693
  %v702 = vadd.f32 %v687, %v693
  %703 = vst.msk [vmem:[%s8] sm:$0xff] %vm608, %v695
  %704 = vst.msk [vmem:[%s8 + $0x8] sm:$0xff] %vm608, %v696
  %705 = vst.msk [vmem:[%s8 + $0x10] sm:$0xff] %vm608, %v697
  %706 = vst.msk [vmem:[%s8 + $0x18] sm:$0xff] %vm608, %v698
  %707 = vst.msk [vmem:[%s8 + $0x20] sm:$0xff] %vm608, %v699
  %708 = vst.msk [vmem:[%s8 + $0x28] sm:$0xff] %vm608, %v700
  %709 = vst.msk [vmem:[%s8 + $0x30] sm:$0xff] %vm608, %v701
  %710 = vst.msk [vmem:[%s8 + $0x38] sm:$0xff] %vm608, %v702
  // Predicated region
  $region34: #{gcn_forward.1} parent=0 // pred_check
    _
  $region35: #{gcn_forward.1} parent=0 // pred_check_branch
    %712 = sbr.rel (0) target = $region37
  $region36: #{gcn_forward.1} parent=0 // pred_region
    _
  $region37: #{gcn_forward.1} parent=0 // pred_fallthru
    _
  // Predicated region
  $region38: #{gcn_forward.1} parent=0 // pred_check
    _
  $region39: #{gcn_forward.1} parent=0 // pred_check_branch
    %714 = sbr.rel (0) target = $region41
  $region40: #{gcn_forward.1} parent=0 // pred_region
    _
  $region41: #{gcn_forward.1} parent=0 // pred_fallthru
    _

</llo_original>
